<compile_context>
chip_gen: v7x
topology: tpu7x:2x2x1
jax: 0.10.0
libtpu: 0.0.40
codegen_flags: <defaults>
</compile_context>

<pallas_src>
import jax
import jax.numpy as jnp
from jax.experimental import pallas as pl
from jax.experimental.pallas import tpu as pltpu


def _fourier_attn_kernel(f_re_ref, f_im_ref, avg_ref, w2r_ref, w2i_ref,
                         b2_ref, out_ref):
    # f_re_ref : (1, C, T)   real half of the rFFT features (lanes = tokens)
    # f_im_ref : (1, C, T)   imag half
    # avg_ref  : (1, 2C, 1)  per-(batch, channel) gate, blocked [re ; im] order
    # w2r_ref  : (2C, C)     conv_layer 1x1 weight columns acting on the real half
    # w2i_ref  : (2C, C)     conv_layer 1x1 weight columns acting on the imag half
    # b2_ref   : (2C, 1)     conv_layer bias (column), blocked order
    # out_ref  : (1, 2C, T)  blocked output: rows [:C] real, [C:] imag
    y = (jnp.dot(w2r_ref[...], f_re_ref[0], preferred_element_type=jnp.float32)
         + jnp.dot(w2i_ref[...], f_im_ref[0], preferred_element_type=jnp.float32)
         + b2_ref[...])                                   # (2C, T), f32
    y = jnp.where(y >= 0, y, 0.2 * y)                     # LeakyReLU(0.2), f32
    y = y * avg_ref[0]                                    # channel gate over lanes
    out_ref[0] = y.astype(out_ref.dtype)                  # cast only at the store


def fourier_attn(x, w1, b1, w2, b2, fft_norm="ortho",
                 feature_dtype=jnp.bfloat16,
                 token_block_bytes=2 << 20,
                 token_tile=None):
    """x: (B, C, H, W) float32 (NCHW, like the PyTorch module).

    w1/b1: Conv2d(C, 2C, 1) of avg_pool_seq; w2/b2: Conv2d(2C, 2C, 1) conv_layer.
    feature_dtype: dtype of the FFT features / kernel output (bf16 default for
    bandwidth; use jnp.float32 for bit-accurate comparisons).
    token_tile: optional explicit token-tile override (testing / tuning).
    """
    B, C, H, W = x.shape
    Wf = W // 2 + 1
    HWf = H * Wf
    C2 = 2 * C
    feat_bytes = jnp.dtype(feature_dtype).itemsize

    # ---- gate: AdaptiveAvgPool2d(1) + Conv2d(C, 2C, 1) -- tiny, stays in JAX --
    pooled = jnp.mean(x.astype(jnp.float32), axis=(2, 3))                 # (B, C)
    avg_il = pooled @ w1.astype(jnp.float32).T + b1.astype(jnp.float32)   # (B, 2C) interleaved

    # ---- glue: forward rFFT (no Pallas FFT primitive) ------------------------
    # TODO(synk): FFT / inverse FFT have no Pallas equivalent; computed in plain JAX.
    ffted = jnp.fft.rfft2(x.astype(jnp.float32), norm=fft_norm)           # (B, C, H, Wf) complex
    f_re = ffted.real.reshape(B, C, HWf).astype(feature_dtype)            # channel-major, lane = token
    f_im = ffted.imag.reshape(B, C, HWf).astype(feature_dtype)

    # PyTorch interleaves channels as (c0_re, c0_im, c1_re, ...).  We work in
    # blocked [all-real ; all-imag] order instead: permute the (tiny) weights /
    # bias / gate once so no interleaved stack slab is ever materialized.
    perm = jnp.concatenate([2 * jnp.arange(C), 2 * jnp.arange(C) + 1])    # blocked -> interleaved
    w2_b = w2.astype(jnp.float32)[perm][:, perm]                          # (2C, 2C) blocked both ways
    w2r = w2_b[:, :C].astype(feature_dtype)                               # acts on real half
    w2i = w2_b[:, C:].astype(feature_dtype)                               # acts on imag half
    b2_col = b2.astype(jnp.float32)[perm].reshape(C2, 1)                  # (2C, 1)
    avg = avg_il[:, perm].reshape(B, C2, 1).astype(jnp.float32)           # (B, 2C, 1)

    # ---- token-axis tiling: size T from a byte budget (~1-4 MB blocks) -------
    if token_tile is not None:
        T = int(token_tile)
    else:
        t_budget = max(512, int(token_block_bytes) // max(C2 * feat_bytes, 1))
        t_budget = max(128, (t_budget // 128) * 128)       # multiple of 128 (lane-dense)
        T = HWf if HWf <= t_budget else t_budget
    num_t = pl.cdiv(HWf, T)
    # v7x has 2 TensorCores: make sure the "parallel" grid has >= 2 programs.
    if B * num_t < 2 and HWf > 256:
        T = max(128, (((HWf + 1) // 2) + 127) // 128 * 128)
        num_t = pl.cdiv(HWf, T)

    # ---- derive the VMEM cap from actual block bytes (v7x-safe) --------------
    in_block = 2 * C * T * feat_bytes                      # f_re + f_im blocks
    out_block = C2 * T * feat_bytes
    w_bytes = 2 * C2 * C * feat_bytes + 2 * C2 * 4
    vmem_needed = 2 * in_block + 2 * out_block + w_bytes   # double-buffered I/O + resident weights
    vmem_limit = int(min(max(vmem_needed + (4 << 20), 16 << 20), 64 << 20))

    out_cm = pl.pallas_call(
        _fourier_attn_kernel,
        out_shape=jax.ShapeDtypeStruct((B, C2, HWf), feature_dtype),
        grid=(B, num_t),
        in_specs=[
            pl.BlockSpec((1, C, T), lambda b, t: (b, 0, t)),    # fft real half
            pl.BlockSpec((1, C, T), lambda b, t: (b, 0, t)),    # fft imag half
            pl.BlockSpec((1, C2, 1), lambda b, t: (b, 0, 0)),   # per-batch gate
            pl.BlockSpec((C2, C), lambda b, t: (0, 0)),         # w2 (real cols), VMEM-resident
            pl.BlockSpec((C2, C), lambda b, t: (0, 0)),         # w2 (imag cols), VMEM-resident
            pl.BlockSpec((C2, 1), lambda b, t: (0, 0)),         # bias
        ],
        out_specs=pl.BlockSpec((1, C2, T), lambda b, t: (b, 0, t)),
        compiler_params=pltpu.CompilerParams(
            dimension_semantics=("parallel", "parallel"),
            vmem_limit_bytes=vmem_limit),
    )(f_re, f_im, avg, w2r, w2i, b2_col)

    # ---- glue: blocked output -> complex -> inverse rFFT ---------------------
    out_re = out_cm[:, :C].astype(jnp.float32).reshape(B, C, H, Wf)       # cheap contiguous slices
    out_im = out_cm[:, C:].astype(jnp.float32).reshape(B, C, H, Wf)
    out_c = jax.lax.complex(out_re, out_im)
    output = jnp.fft.irfft2(out_c, s=(H, W), norm=fft_norm)               # (B, C, H, W)
    return output.astype(x.dtype)


def _reference(x, w1, b1, w2, b2, fft_norm="ortho"):
    """Pure-JAX reference mirroring the PyTorch FourierAttn.forward."""
    B, C, H, W = x.shape
    pooled = jnp.mean(x, axis=(2, 3))                          # (B, C)
    avg = pooled @ w1.T + b1                                   # (B, 2C)
    ffted = jnp.fft.rfft2(x, norm=fft_norm)
    f = jnp.stack([ffted.real, ffted.imag], axis=2).reshape(B, 2 * C, H, -1)
    y = jnp.einsum("oc,bchw->bohw", w2, f) + b2[None, :, None, None]
    y = jnp.where(y >= 0, y, 0.2 * y)
    y = y * avg[:, :, None, None]
    ys = y.reshape(B, C, 2, H, -1)
    yc = jax.lax.complex(ys[:, :, 0], ys[:, :, 1])
    return jnp.fft.irfft2(yc, s=(H, W), norm=fft_norm)


if __name__ == "__main__":
    B, C, H, W = 2, 4, 16, 16
    key = jax.random.PRNGKey(0)
    k_x, k_w1, k_b1, k_w2, k_b2 = jax.random.split(key, 5)

    x = jax.random.normal(k_x, (B, C, H, W), dtype=jnp.float32)
    # Conv2d(C, 2C, 1) weights -> (2C, C); Conv2d(2C, 2C, 1) -> (2C, 2C)
    w1 = 0.1 * jax.random.normal(k_w1, (2 * C, C), dtype=jnp.float32)
    b1 = 0.1 * jax.random.normal(k_b1, (2 * C,), dtype=jnp.float32)
    w2 = 0.1 * jax.random.normal(k_w2, (2 * C, 2 * C), dtype=jnp.float32)
    b2 = 0.1 * jax.random.normal(k_b2, (2 * C,), dtype=jnp.float32)

    ref = jax.block_until_ready(_reference(x, w1, b1, w2, b2))

    # f32 feature path, single token block (tight check against reference).
    out_f32 = jax.block_until_ready(
        fourier_attn(x, w1, b1, w2, b2, feature_dtype=jnp.float32))
    assert out_f32.shape == (B, C, H, W)
    assert jnp.allclose(out_f32, ref, atol=1e-4, rtol=1e-4), "mismatch (f32)"

    # f32 feature path, tiled token axis with a ragged tail (HWf=144, T=128).
    out_tiled = jax.block_until_ready(
        fourier_attn(x, w1, b1, w2, b2, feature_dtype=jnp.float32,
                     token_tile=128))
    assert jnp.allclose(out_tiled, ref, atol=1e-4, rtol=1e-4), "mismatch (tiled)"

    # Default bf16 feature path (bandwidth mode): loose tolerance.
    out_bf16 = jax.block_until_ready(fourier_attn(x, w1, b1, w2, b2))
    assert out_bf16.shape == (B, C, H, W)
    assert jnp.all(jnp.isfinite(out_bf16))
    assert jnp.allclose(out_bf16, ref, atol=5e-2, rtol=5e-2), "mismatch (bf16)"

    print("KERNEL_OK")
</pallas_src>

<mosaic_0001>
module attributes {stable_mosaic.version = 11 : i64} {
  func.func @_fourier_attn_kernel(%arg0: i32, %arg1: i32, %arg2: memref<1x4x144xf32, #tpu.memory_space<vmem>>, %arg3: memref<1x4x144xf32, #tpu.memory_space<vmem>>, %arg4: memref<1x8x1xf32, #tpu.memory_space<vmem>>, %arg5: memref<8x4xf32, #tpu.memory_space<vmem>>, %arg6: memref<8x4xf32, #tpu.memory_space<vmem>>, %arg7: memref<8x1xf32, #tpu.memory_space<vmem>>, %arg8: memref<1x8x144xf32, #tpu.memory_space<vmem>>) attributes {dimension_semantics = [#tpu.dimension_semantics<parallel>, #tpu.dimension_semantics<parallel>], iteration_bounds = array<i64: 2, 1>, scalar_prefetch = 0 : i64, scratch_operands = 0 : i64, tpu.core_type = #tpu.core_type<tc>, window_params = [{transform_indices = @transform_0, window_bounds = array<i64: 1, 4, 144>}, {transform_indices = @transform_1, window_bounds = array<i64: 1, 4, 144>}, {transform_indices = @transform_2, window_bounds = array<i64: 1, 8, 1>}, {pipeline_mode = #tpu.pipeline_mode<synchronous>, transform_indices = @transform_3, window_bounds = array<i64: 8, 4>}, {pipeline_mode = #tpu.pipeline_mode<synchronous>, transform_indices = @transform_4, window_bounds = array<i64: 8, 4>}, {pipeline_mode = #tpu.pipeline_mode<synchronous>, transform_indices = @transform_5, window_bounds = array<i64: 8, 1>}, {transform_indices = @transform_6, window_bounds = array<i64: 1, 8, 144>}]} {
    %c0 = arith.constant 0 : index
    %c0_0 = arith.constant 0 : index
    %0 = vector.load %arg5[%c0, %c0_0] : memref<8x4xf32, #tpu.memory_space<vmem>>, vector<8x4xf32>
    %c0_1 = arith.constant 0 : index
    %c0_2 = arith.constant 0 : index
    %c0_3 = arith.constant 0 : index
    %1 = vector.load %arg2[%c0_1, %c0_2, %c0_3] : memref<1x4x144xf32, #tpu.memory_space<vmem>>, vector<1x4x144xf32>
    %2 = vector.shape_cast %1 : vector<1x4x144xf32> to vector<4x144xf32>
    %cst = arith.constant dense<0.000000e+00> : vector<8x144xf32>
    %3 = tpu.matmul %0, %2, %cst {dimension_numbers = #tpu.dot_dimension_numbers<[1], [0], [0], [1], [0, 0, 1, 1], [], []>} : vector<8x4xf32>, vector<4x144xf32>, vector<8x144xf32> -> vector<8x144xf32>
    %c0_4 = arith.constant 0 : index
    %c0_5 = arith.constant 0 : index
    %4 = vector.load %arg6[%c0_4, %c0_5] : memref<8x4xf32, #tpu.memory_space<vmem>>, vector<8x4xf32>
    %c0_6 = arith.constant 0 : index
    %c0_7 = arith.constant 0 : index
    %c0_8 = arith.constant 0 : index
    %5 = vector.load %arg3[%c0_6, %c0_7, %c0_8] : memref<1x4x144xf32, #tpu.memory_space<vmem>>, vector<1x4x144xf32>
    %6 = vector.shape_cast %5 : vector<1x4x144xf32> to vector<4x144xf32>
    %cst_9 = arith.constant dense<0.000000e+00> : vector<8x144xf32>
    %7 = tpu.matmul %4, %6, %cst_9 {dimension_numbers = #tpu.dot_dimension_numbers<[1], [0], [0], [1], [0, 0, 1, 1], [], []>} : vector<8x4xf32>, vector<4x144xf32>, vector<8x144xf32> -> vector<8x144xf32>
    %8 = arith.addf %3, %7 : vector<8x144xf32>
    %c0_10 = arith.constant 0 : index
    %c0_11 = arith.constant 0 : index
    %9 = vector.load %arg7[%c0_10, %c0_11] : memref<8x1xf32, #tpu.memory_space<vmem>>, vector<8x1xf32>
    %10 = vector.broadcast %9 : vector<8x1xf32> to vector<8x144xf32>
    %11 = arith.addf %8, %10 : vector<8x144xf32>
    %cst_12 = arith.constant 0.000000e+00 : f32
    %12 = vector.broadcast %cst_12 : f32 to vector<8x144xf32>
    %13 = arith.cmpf oge, %11, %12 : vector<8x144xf32>
    %cst_13 = arith.constant 2.000000e-01 : f32
    %14 = vector.broadcast %cst_13 : f32 to vector<8x144xf32>
    %15 = arith.mulf %14, %11 : vector<8x144xf32>
    %16 = arith.select %13, %11, %15 : vector<8x144xi1>, vector<8x144xf32>
    %c0_14 = arith.constant 0 : index
    %c0_15 = arith.constant 0 : index
    %c0_16 = arith.constant 0 : index
    %17 = vector.load %arg4[%c0_14, %c0_15, %c0_16] : memref<1x8x1xf32, #tpu.memory_space<vmem>>, vector<1x8x1xf32>
    %18 = vector.shape_cast %17 : vector<1x8x1xf32> to vector<8x1xf32>
    %19 = vector.broadcast %18 : vector<8x1xf32> to vector<8x144xf32>
    %20 = arith.mulf %16, %19 : vector<8x144xf32>
    %c0_17 = arith.constant 0 : index
    %c0_18 = arith.constant 0 : index
    %c0_19 = arith.constant 0 : index
    %21 = vector.load %arg8[%c0_17, %c0_18, %c0_19] : memref<1x8x144xf32, #tpu.memory_space<vmem>>, vector<1x8x144xf32>
    %22 = vector.shape_cast %21 : vector<1x8x144xf32> to vector<8x144xf32>
    %23 = vector.shape_cast %20 : vector<8x144xf32> to vector<1x8x144xf32>
    tpu.vector_store %arg8[%c0_17, %c0_18, %c0_19], %23 {strides = array<i32>} : memref<1x8x144xf32, #tpu.memory_space<vmem>>, vector<1x8x144xf32>,
    return
  }
  func.func @transform_0(%arg0: i32, %arg1: i32) -> (i32, i32, i32) {
    %c0_i32 = arith.constant 0 : i32
    %c0_i32_0 = arith.constant 0 : i32
    return %arg0, %c0_i32, %arg1 : i32, i32, i32
  }
  func.func @transform_1(%arg0: i32, %arg1: i32) -> (i32, i32, i32) {
    %c0_i32 = arith.constant 0 : i32
    %c0_i32_0 = arith.constant 0 : i32
    return %arg0, %c0_i32, %arg1 : i32, i32, i32
  }
  func.func @transform_2(%arg0: i32, %arg1: i32) -> (i32, i32, i32) {
    %c0_i32 = arith.constant 0 : i32
    %c0_i32_0 = arith.constant 0 : i32
    %c0_i32_1 = arith.constant 0 : i32
    return %arg0, %c0_i32, %c0_i32_0 : i32, i32, i32
  }
  func.func @transform_3(%arg0: i32, %arg1: i32) -> (i32, i32) {
    %c0_i32 = arith.constant 0 : i32
    %c0_i32_0 = arith.constant 0 : i32
    %c0_i32_1 = arith.constant 0 : i32
    return %c0_i32, %c0_i32_0 : i32, i32
  }
  func.func @transform_4(%arg0: i32, %arg1: i32) -> (i32, i32) {
    %c0_i32 = arith.constant 0 : i32
    %c0_i32_0 = arith.constant 0 : i32
    %c0_i32_1 = arith.constant 0 : i32
    return %c0_i32, %c0_i32_0 : i32, i32
  }
  func.func @transform_5(%arg0: i32, %arg1: i32) -> (i32, i32) {
    %c0_i32 = arith.constant 0 : i32
    %c0_i32_0 = arith.constant 0 : i32
    %c0_i32_1 = arith.constant 0 : i32
    return %c0_i32, %c0_i32_0 : i32, i32
  }
  func.func @transform_6(%arg0: i32, %arg1: i32) -> (i32, i32, i32) {
    %c0_i32 = arith.constant 0 : i32
    %c0_i32_0 = arith.constant 0 : i32
    return %arg0, %c0_i32, %arg1 : i32, i32, i32
  }
}

</mosaic_0001>

<llo_original>
// kernel: tpu_custom_call.1
$region0: #{tpu_custom_call.1}
  #allocation0 [shape = 'u32[]', space=smem, size = 0x4, offset = 0x4, fixed_abs, tag = 'smem constant byte address 0x4 - core index']
  #allocation1 [shape = 'u32[144,128]{1,0:T(1,128)}', space=vmem, size = 0x12000, scoped, tag = 'internal scratch']
  %s0 = inlined_call_operand.vmem [shape: f32[2,4,144], index: 0, kind: input, shape index: {}]
  %s1 = inlined_call_operand.vmem [shape: f32[2,4,144], index: 1, kind: input, shape index: {}]
  %s2 = inlined_call_operand.vmem [shape: f32[2,8,1], index: 2, kind: input, shape index: {}]
  %s3 = inlined_call_operand.vmem [shape: f32[8,4], index: 3, kind: input, shape index: {}]
  %s4 = inlined_call_operand.vmem [shape: f32[8,4], index: 4, kind: input, shape index: {}]
  %s5 = inlined_call_operand.vmem [shape: f32[8,1], index: 5, kind: input, shape index: {}]
  %s6 = inlined_call_operand.hbm [shape: f32[2,8,144], index: 6, kind: output, shape index: {}]
  %s7 = sld [smem:[#allocation0]]
  $region57: #{tpu_custom_call.1} parent=0
    _
  %s9 = ssub.s32 1, %s7
  %s10 = scalar_select 0, %s9, %s7
  $region1: #{tpu_custom_call.1} parent=0
    #allocation2 [shape = 'u8[16384]{0}', space=vmem, size = 0x4000, scoped, tag = 'output window, operand 0']
    #allocation3 [shape = 's32[2]{0}', space=sflag, size = 0x8, scoped, tag = 'scoped memory for tpu_custom_call.1']
    %11 = vsyncpa [#allocation3], 0
    %s12 = scalar_lea.sflag [#allocation3], 1
    %13 = vsyncpa %s12, 0
    loop: start=0, step=1, limit=4
    $region2: #{tpu_custom_call.1} parent=1 // loop_pre_header
      _
    $region3: #{tpu_custom_call.1} parent=1 // loop_header
      %s15 = sphi 0, %s19
      %p16 = scmp.ge.s32.totalorder %s15, 4
      %s22 = sphi 0, %s34
      %s23 = sphi 0, %s30
      %s24 = sphi 0, %s22
      %s25 = sphi 0, %s23
      %s26 = sphi 0, %s24
      %s27 = sphi 0, %s25
      %s39 = sphi 0, %s41
      %s42 = sphi 0, %s39
      %s43 = sphi 0, %s42
      %s59 = sphi 0, %s43
      %s67 = sphi 0, %s69
      %s70 = sphi 0, %s67
      %s71 = sphi 0, %s70
      %s87 = sphi 0, %s71
      %s93 = sphi 0, %s95
      %s96 = sphi 0, %s93
      %s97 = sphi 0, %s96
      %s113 = sphi 0, %s97
      %s117 = sphi 0, %s117
      %s119 = sphi 0, %s117
      %s120 = sphi 0, %s119
      %s134 = sphi 0, %s120
      %s138 = sphi 0, %s138
      %s140 = sphi 0, %s138
      %s141 = sphi 0, %s140
      %s155 = sphi 0, %s141
      %s159 = sphi 0, %s159
      %s161 = sphi 0, %s159
      %s162 = sphi 0, %s161
      %s176 = sphi 0, %s162
      %s184 = sphi 0, %s186
      %s187 = sphi 0, %s184
      %s188 = sphi 0, %s187
      %s204 = sphi 0, %s188
    $region4: #{tpu_custom_call.1} parent=1 // loop_header_branch
      %18 = sbr.rel (%p16) target = $region8
    $region5: #{tpu_custom_call.1} parent=1 // loop_body
      %s20 = ssub.s32 %s15, 1
      %s21 = ssub.s32 %s15, 2
      %s28 = sadd.s32 1, %s23
      %p29 = scmp.ge.s32.totalorder %s28, 1
      %s30 = scalar_select %p29, 0, %s28
      %s31 = sadd.s32 1, %s22
      %s32 = scalar_select %p29, %s31, %s22
      %p33 = scmp.ge.s32.totalorder %s32, 2
      %s34 = scalar_select %p33, 0, %s32
      %s35 = ssub.s32 %s22, %s34
      %s36 = ssub.s32 %s23, %s30
      %s37 = sor.u32 %s35, %s36
      %p38 = scmp.eq.s32.totalorder %s37, 0
      %s40 = sadd.s32 %s39, 1
      %s41 = scalar_select %p38, %s39, %s40
      %p44 = pneg %p38
      %p45 = scmp.eq.s32.totalorder %s15, 1
      %p46 = por %p44, %p45
      %p47 = scmp.ne.s32.totalorder %s39, %s42
      %p48 = scmp.eq.s32.totalorder %s15, 0
      %p49 = por %p47, %p48
      %p50 = scmp.ne.s32.totalorder %s39, %s42
      %p51 = scmp.eq.s32.totalorder %s20, 1
      %p52 = por %p50, %p51
      %p53 = scmp.ne.s32.totalorder %s42, %s43
      %p54 = scmp.eq.s32.totalorder %s20, 0
      %p55 = por %p53, %p54
      %p56 = scmp.ne.s32.totalorder %s42, %s43
      %p57 = scmp.eq.s32.totalorder %s21, 1
      %p58 = por %p56, %p57
      %p60 = scmp.ne.s32.totalorder %s43, %s59
      %p61 = scmp.eq.s32.totalorder %s21, 0
      %p62 = por %p60, %p61
      %s63 = ssub.s32 %s22, %s34
      %s64 = ssub.s32 %s23, %s30
      %s65 = sor.u32 %s63, %s64
      %p66 = scmp.eq.s32.totalorder %s65, 0
      %s68 = sadd.s32 %s67, 1
      %s69 = scalar_select %p66, %s67, %s68
      %p72 = pneg %p66
      %p73 = scmp.eq.s32.totalorder %s15, 1
      %p74 = por %p72, %p73
      %p75 = scmp.ne.s32.totalorder %s67, %s70
      %p76 = scmp.eq.s32.totalorder %s15, 0
      %p77 = por %p75, %p76
      %p78 = scmp.ne.s32.totalorder %s67, %s70
      %p79 = scmp.eq.s32.totalorder %s20, 1
      %p80 = por %p78, %p79
      %p81 = scmp.ne.s32.totalorder %s70, %s71
      %p82 = scmp.eq.s32.totalorder %s20, 0
      %p83 = por %p81, %p82
      %p84 = scmp.ne.s32.totalorder %s70, %s71
      %p85 = scmp.eq.s32.totalorder %s21, 1
      %p86 = por %p84, %p85
      %p88 = scmp.ne.s32.totalorder %s71, %s87
      %p89 = scmp.eq.s32.totalorder %s21, 0
      %p90 = por %p88, %p89
      %s91 = ssub.s32 %s22, %s34
      %p92 = scmp.eq.s32.totalorder %s91, 0
      %s94 = sadd.s32 %s93, 1
      %s95 = scalar_select %p92, %s93, %s94
      %p98 = pneg %p92
      %p99 = scmp.eq.s32.totalorder %s15, 1
      %p100 = por %p98, %p99
      %p101 = scmp.ne.s32.totalorder %s93, %s96
      %p102 = scmp.eq.s32.totalorder %s15, 0
      %p103 = por %p101, %p102
      %p104 = scmp.ne.s32.totalorder %s93, %s96
      %p105 = scmp.eq.s32.totalorder %s20, 1
      %p106 = por %p104, %p105
      %p107 = scmp.ne.s32.totalorder %s96, %s97
      %p108 = scmp.eq.s32.totalorder %s20, 0
      %p109 = por %p107, %p108
      %p110 = scmp.ne.s32.totalorder %s96, %s97
      %p111 = scmp.eq.s32.totalorder %s21, 1
      %p112 = por %p110, %p111
      %p114 = scmp.ne.s32.totalorder %s97, %s113
      %p115 = scmp.eq.s32.totalorder %s21, 0
      %p116 = por %p114, %p115
      %s118 = sadd.s32 %s117, 1
      %p121 = scmp.eq.s32.totalorder %s15, 1
      %p122 = scmp.ne.s32.totalorder %s117, %s119
      %p123 = scmp.eq.s32.totalorder %s15, 0
      %p124 = por %p122, %p123
      %p125 = scmp.ne.s32.totalorder %s117, %s119
      %p126 = scmp.eq.s32.totalorder %s20, 1
      %p127 = por %p125, %p126
      %p128 = scmp.ne.s32.totalorder %s119, %s120
      %p129 = scmp.eq.s32.totalorder %s20, 0
      %p130 = por %p128, %p129
      %p131 = scmp.ne.s32.totalorder %s119, %s120
      %p132 = scmp.eq.s32.totalorder %s21, 1
      %p133 = por %p131, %p132
      %p135 = scmp.ne.s32.totalorder %s120, %s134
      %p136 = scmp.eq.s32.totalorder %s21, 0
      %p137 = por %p135, %p136
      %s139 = sadd.s32 %s138, 1
      %p142 = scmp.eq.s32.totalorder %s15, 1
      %p143 = scmp.ne.s32.totalorder %s138, %s140
      %p144 = scmp.eq.s32.totalorder %s15, 0
      %p145 = por %p143, %p144
      %p146 = scmp.ne.s32.totalorder %s138, %s140
      %p147 = scmp.eq.s32.totalorder %s20, 1
      %p148 = por %p146, %p147
      %p149 = scmp.ne.s32.totalorder %s140, %s141
      %p150 = scmp.eq.s32.totalorder %s20, 0
      %p151 = por %p149, %p150
      %p152 = scmp.ne.s32.totalorder %s140, %s141
      %p153 = scmp.eq.s32.totalorder %s21, 1
      %p154 = por %p152, %p153
      %p156 = scmp.ne.s32.totalorder %s141, %s155
      %p157 = scmp.eq.s32.totalorder %s21, 0
      %p158 = por %p156, %p157
      %s160 = sadd.s32 %s159, 1
      %p163 = scmp.eq.s32.totalorder %s15, 1
      %p164 = scmp.ne.s32.totalorder %s159, %s161
      %p165 = scmp.eq.s32.totalorder %s15, 0
      %p166 = por %p164, %p165
      %p167 = scmp.ne.s32.totalorder %s159, %s161
      %p168 = scmp.eq.s32.totalorder %s20, 1
      %p169 = por %p167, %p168
      %p170 = scmp.ne.s32.totalorder %s161, %s162
      %p171 = scmp.eq.s32.totalorder %s20, 0
      %p172 = por %p170, %p171
      %p173 = scmp.ne.s32.totalorder %s161, %s162
      %p174 = scmp.eq.s32.totalorder %s21, 1
      %p175 = por %p173, %p174
      %p177 = scmp.ne.s32.totalorder %s162, %s176
      %p178 = scmp.eq.s32.totalorder %s21, 0
      %p179 = por %p177, %p178
      %s180 = ssub.s32 %s22, %s34
      %s181 = ssub.s32 %s23, %s30
      %s182 = sor.u32 %s180, %s181
      %p183 = scmp.eq.s32.totalorder %s182, 0
      %s185 = sadd.s32 %s184, 1
      %s186 = scalar_select %p183, %s184, %s185
      %p189 = pneg %p183
      %p190 = scmp.eq.s32.totalorder %s15, 1
      %p191 = por %p189, %p190
      %p192 = scmp.ne.s32.totalorder %s184, %s187
      %p193 = scmp.eq.s32.totalorder %s15, 0
      %p194 = por %p192, %p193
      %p195 = scmp.ne.s32.totalorder %s184, %s187
      %p196 = scmp.eq.s32.totalorder %s20, 1
      %p197 = por %p195, %p196
      %p198 = scmp.ne.s32.totalorder %s187, %s188
      %p199 = scmp.eq.s32.totalorder %s20, 0
      %p200 = por %p198, %p199
      %p201 = scmp.ne.s32.totalorder %s187, %s188
      %p202 = scmp.eq.s32.totalorder %s21, 1
      %p203 = por %p201, %p202
      %p205 = scmp.ne.s32.totalorder %s188, %s204
      %p206 = scmp.eq.s32.totalorder %s21, 0
      %p207 = por %p205, %p206
      %p208 = scmp.le.s32.totalorder 1, %s15
      %p209 = scmp.lt.s32.totalorder %s15, 3
      %p210 = pnand %p208, %p209
      %p211 = pneg %p210
      // Predicated region
      $region9: #{tpu_custom_call.1} parent=5 // pred_check
        _
      $region10: #{tpu_custom_call.1} parent=5 // pred_check_branch
        %213 = sbr.rel (%p210) target = $region12
      $region11: #{tpu_custom_call.1} parent=5 // pred_region
        %s214 = ssub.s32 %s15, 1
        // Predicated region
        $region13: #{tpu_custom_call.1} parent=11 // pred_check
          %p215 = pneg %p130
        $region14: #{tpu_custom_call.1} parent=11 // pred_check_branch
          %217 = sbr.rel (%p215) target = $region16
        $region15: #{tpu_custom_call.1} parent=11 // pred_region
          _
        $region16: #{tpu_custom_call.1} parent=11 // pred_fallthru
          _
        // Predicated region
        $region17: #{tpu_custom_call.1} parent=11 // pred_check
          %p218 = pneg %p151
        $region18: #{tpu_custom_call.1} parent=11 // pred_check_branch
          %220 = sbr.rel (%p218) target = $region20
        $region19: #{tpu_custom_call.1} parent=11 // pred_region
          _
        $region20: #{tpu_custom_call.1} parent=11 // pred_fallthru
          _
        // Predicated region
        $region21: #{tpu_custom_call.1} parent=11 // pred_check
          %p221 = pneg %p172
        $region22: #{tpu_custom_call.1} parent=11 // pred_check_branch
          %223 = sbr.rel (%p221) target = $region24
        $region23: #{tpu_custom_call.1} parent=11 // pred_region
          _
        $region24: #{tpu_custom_call.1} parent=11 // pred_fallthru
          _
      $region12: #{tpu_custom_call.1} parent=5 // pred_fallthru
        _
      %p224 = scmp.lt.s32.totalorder %s15, 2
      // Predicated region
      $region25: #{tpu_custom_call.1} parent=5 // pred_check
        %p225 = pneg %p224
      $region26: #{tpu_custom_call.1} parent=5 // pred_check_branch
        %227 = sbr.rel (%p225) target = $region28
      $region27: #{tpu_custom_call.1} parent=5 // pred_region
        // Predicated region
        $region29: #{tpu_custom_call.1} parent=27 // pred_check
          %p228 = pneg %p49
        $region30: #{tpu_custom_call.1} parent=27 // pred_check_branch
          %230 = sbr.rel (%p228) target = $region32
        $region31: #{tpu_custom_call.1} parent=27 // pred_region
          %s231 = smul.u32 2, %s23
          %p232 = scmp.lt.s32.totalorder %s22, 1
          %s233 = scalar_select %p232, %s22, 1
          %p234 = scmp.lt.s32.totalorder %s231, 1
          %s235 = scalar_select %p234, %s231, 1
          %s236 = smul.addr %s233, 2
          %s237 = sadd.s32 %s235, %s236
          %s238 = smul.addr %s237, 4
          %s239 = scalar_lea.vmem %s0, %s238
          %s240 = smul.u32 2, %s23
        $region32: #{tpu_custom_call.1} parent=27 // pred_fallthru
          _
        // Predicated region
        $region33: #{tpu_custom_call.1} parent=27 // pred_check
          %p241 = pneg %p77
        $region34: #{tpu_custom_call.1} parent=27 // pred_check_branch
          %243 = sbr.rel (%p241) target = $region36
        $region35: #{tpu_custom_call.1} parent=27 // pred_region
          %s244 = smul.u32 2, %s23
          %p245 = scmp.lt.s32.totalorder %s22, 1
          %s246 = scalar_select %p245, %s22, 1
          %p247 = scmp.lt.s32.totalorder %s244, 1
          %s248 = scalar_select %p247, %s244, 1
          %s249 = smul.addr %s246, 2
          %s250 = sadd.s32 %s248, %s249
          %s251 = smul.addr %s250, 4
          %s252 = scalar_lea.vmem %s1, %s251
          %s253 = smul.u32 2, %s23
        $region36: #{tpu_custom_call.1} parent=27 // pred_fallthru
          _
        // Predicated region
        $region37: #{tpu_custom_call.1} parent=27 // pred_check
          %p254 = pneg %p103
        $region38: #{tpu_custom_call.1} parent=27 // pred_check_branch
          %256 = sbr.rel (%p254) target = $region40
        $region39: #{tpu_custom_call.1} parent=27 // pred_region
          %p257 = scmp.lt.s32.totalorder %s22, 1
          %s258 = scalar_select %p257, %s22, 1
          %s259 = smul.addr %s258, 8
          %s260 = scalar_lea.vmem %s2, %s259
        $region40: #{tpu_custom_call.1} parent=27 // pred_fallthru
          _
      $region28: #{tpu_custom_call.1} parent=5 // pred_fallthru
        _
      %p261 = scmp.le.s32.totalorder 1, %s15
      %p262 = scmp.lt.s32.totalorder %s15, 3
      %p263 = pnand %p261, %p262
      %p264 = pneg %p263
      // Predicated region
      $region41: #{tpu_custom_call.1} parent=5 // pred_check
        _
      $region42: #{tpu_custom_call.1} parent=5 // pred_check_branch
        %266 = sbr.rel (%p263) target = $region44
      $region43: #{tpu_custom_call.1} parent=5 // pred_region
        %s267 = ssub.s32 %s15, 1
        %s268 = smul.u32 2, %s25
        %p269 = scmp.lt.s32.totalorder %s24, 1
        %s270 = scalar_select %p269, %s24, 1
        %p271 = scmp.lt.s32.totalorder %s268, 1
        %s272 = scalar_select %p271, %s268, 1
        %s273 = smul.addr %s270, 2
        %s274 = sadd.s32 %s272, %s273
        %s275 = smul.addr %s274, 4
        %s276 = scalar_lea.vmem %s0, %s275
        %p277 = pneg %p55
        %p278 = pneg %p52
        %s279 = smul.u32 2, %s25
        %p280 = scmp.lt.s32.totalorder %s24, 1
        %s281 = scalar_select %p280, %s24, 1
        %p282 = scmp.lt.s32.totalorder %s279, 1
        %s283 = scalar_select %p282, %s279, 1
        %s284 = smul.addr %s281, 2
        %s285 = sadd.s32 %s283, %s284
        %s286 = smul.addr %s285, 4
        %s287 = scalar_lea.vmem %s1, %s286
        %p288 = pneg %p83
        %p289 = pneg %p80
        %p290 = scmp.lt.s32.totalorder %s24, 1
        %s291 = scalar_select %p290, %s24, 1
        %s292 = smul.addr %s291, 8
        %s293 = scalar_lea.vmem %s2, %s292
        %p294 = pneg %p109
        %p295 = pneg %p106
        %p296 = pneg %p130
        %p297 = pneg %p127
        %p298 = pneg %p151
        %p299 = pneg %p148
        %p300 = pneg %p172
        %p301 = pneg %p169
        %p302 = pneg %p200
        %p303 = pneg %p197
        %s304 = sand.u32 %s187, 1
        %s305 = scalar_lea.sflag [#allocation3], %s304
        %s306 = sand.u32 %s187, 1
        %s307 = smul.addr %s306, 16
        %s308 = scalar_lea.vmem [#allocation2], %s307
        %s309 = smul.u32 2, %s25
        %p310 = scmp.lt.s32.totalorder %s24, 1
        %s311 = scalar_select %p310, %s24, 1
        %p312 = scmp.lt.s32.totalorder %s309, 1
        %s313 = scalar_select %p312, %s309, 1
        %s314 = smul.addr %s311, 2
        %s315 = sadd.s32 %s313, %s314
        %s316 = smul.addr %s315, 4
        %s317 = scalar_lea.vmem %s0, %s316
        %s318 = smul.u32 2, %s25
        %s319 = smul.u32 2, %s25
        %p320 = scmp.lt.s32.totalorder %s24, 1
        %s321 = scalar_select %p320, %s24, 1
        %p322 = scmp.lt.s32.totalorder %s319, 1
        %s323 = scalar_select %p322, %s319, 1
        %s324 = smul.addr %s321, 2
        %s325 = sadd.s32 %s323, %s324
        %s326 = smul.addr %s325, 4
        %s327 = scalar_lea.vmem %s1, %s326
        %s328 = smul.u32 2, %s25
        %p329 = scmp.lt.s32.totalorder %s24, 1
        %s330 = scalar_select %p329, %s24, 1
        %s331 = smul.addr %s330, 8
        %s332 = scalar_lea.vmem %s2, %s331
        %s333 = smul.u32 2, %s25
        %v334 = vld [vmem:[%s3] sm:$0xff]
        %v335 = vld [vmem:[%s317] sm:$0xff]
        %v336 = vld [vmem:[%s4] sm:$0xff]
        %v337 = vld [vmem:[%s327] sm:$0xff]
        %v339 = vcombine.high %v337, %v337
        %vm340 = vcmask 31744
        %v342 = vsel %vm340, %v336, 0
        %vm344 = vcmask 1043456
        %v345 = vsel %vm344, %v337, 0
        %v347 = vsel %vm344, %v339, 0
        %349 = vmatprep.subr.mxu0 %v347
        %350 = vmatpush1.msra.mxu0 %v345
        %351 = vmatprep.subr.mxu0 0.0
        %352 = vmatpush1.msra.mxu0 0.0
        %353 = vmatprep.subr.mxu0 0.0
        %354 = vmatpush1.msra.mxu0 0.0
        %355 = vmatprep.subr.mxu0 0.0
        %356 = vmatpush1.msra.mxu0 0.0
        %357 = vmatprep.subr.mxu0 0.0
        %358 = vmatpush1.msra.mxu0 0.0
        %359 = vmatprep.subr.mxu0 0.0
        %360 = vmatpush1.msra.mxu0 0.0
        %361 = vmatprep.subr.mxu0 0.0
        %362 = vmatpush1.msra.mxu0 0.0
        %363 = vmatprep.subr.mxu0 0.0
        %364 = vmatpush1.msra.mxu0 0.0
        %365 = vmatprep.subr.mxu0 0.0
        %366 = vmatpush1.msra.mxu0 0.0
        %367 = vmatprep.subr.mxu0 0.0
        %368 = vmatpush1.msra.mxu0 0.0
        %369 = vmatprep.subr.mxu0 0.0
        %370 = vmatpush1.msra.mxu0 0.0
        %371 = vmatprep.subr.mxu0 0.0
        %372 = vmatpush1.msra.mxu0 0.0
        %373 = vmatprep.subr.mxu0 0.0
        %374 = vmatpush1.msra.mxu0 0.0
        %375 = vmatprep.subr.mxu0 0.0
        %376 = vmatpush1.msra.mxu0 0.0
        %377 = vmatprep.subr.mxu0 0.0
        %378 = vmatpush1.msra.mxu0 0.0
        %379 = vmatprep.subr.mxu0 0.0
        %380 = vmatpush1.msra.mxu0 0.0
        %381 = vmatprep.subr.mxu0 0.0
        %382 = vmatpush1.msra.mxu0 0.0
        %383 = vmatprep.subr.mxu0 0.0
        %384 = vmatpush1.msra.mxu0 0.0
        %385 = vmatprep.subr.mxu0 0.0
        %386 = vmatpush1.msra.mxu0 0.0
        %387 = vmatprep.subr.mxu0 0.0
        %388 = vmatpush1.msra.mxu0 0.0
        %389 = vmatprep.subr.mxu0 0.0
        %390 = vmatpush1.msra.mxu0 0.0
        %391 = vmatprep.subr.mxu0 0.0
        %392 = vmatpush1.msra.mxu0 0.0
        %393 = vmatprep.subr.mxu0 0.0
        %394 = vmatpush1.msra.mxu0 0.0
        %395 = vmatprep.subr.mxu0 0.0
        %396 = vmatpush1.msra.mxu0 0.0
        %397 = vmatprep.subr.mxu0 0.0
        %398 = vmatpush1.msra.mxu0 0.0
        %399 = vmatprep.subr.mxu0 0.0
        %400 = vmatpush1.msra.mxu0 0.0
        %401 = vmatprep.subr.mxu0 0.0
        %402 = vmatpush1.msra.mxu0 0.0
        %403 = vmatprep.subr.mxu0 0.0
        %404 = vmatpush1.msra.mxu0 0.0
        %405 = vmatprep.subr.mxu0 0.0
        %406 = vmatpush1.msra.mxu0 0.0
        %407 = vmatprep.subr.mxu0 0.0
        %408 = vmatpush1.msra.mxu0 0.0
        %409 = vmatprep.subr.mxu0 0.0
        %410 = vmatpush1.msra.mxu0 0.0
        %411 = vmatprep.subr.mxu0 0.0
        %412 = vmatpush1.msra.mxu0 0.0
        %413 = vmatprep.mubr.f32.mxu0 0.0
        %414 = vmatmul.mubr.f32.gmra.mrb[0].mxu0 %v342
        %v415 = vpop.f32.mrb[0].mxu0
        %v416 = vadd.f32 0.0, %v415
        %v417 = vpop.f32.mrb[0].mxu0
        %v418 = vadd.f32 0.0, %v417
        %419 = vdwg.mxu0
        %v421 = vcombine.high %v335, %v335
        %v423 = vsel %vm340, %v334, 0
        %v425 = vsel %vm344, %v335, 0
        %v427 = vsel %vm344, %v421, 0
        %429 = vmatprep.subr.mxu0 %v427
        %430 = vmatpush1.msra.mxu0 %v425
        %431 = vmatprep.subr.mxu0 0.0
        %432 = vmatpush1.msra.mxu0 0.0
        %433 = vmatprep.subr.mxu0 0.0
        %434 = vmatpush1.msra.mxu0 0.0
        %435 = vmatprep.subr.mxu0 0.0
        %436 = vmatpush1.msra.mxu0 0.0
        %437 = vmatprep.subr.mxu0 0.0
        %438 = vmatpush1.msra.mxu0 0.0
        %439 = vmatprep.subr.mxu0 0.0
        %440 = vmatpush1.msra.mxu0 0.0
        %441 = vmatprep.subr.mxu0 0.0
        %442 = vmatpush1.msra.mxu0 0.0
        %443 = vmatprep.subr.mxu0 0.0
        %444 = vmatpush1.msra.mxu0 0.0
        %445 = vmatprep.subr.mxu0 0.0
        %446 = vmatpush1.msra.mxu0 0.0
        %447 = vmatprep.subr.mxu0 0.0
        %448 = vmatpush1.msra.mxu0 0.0
        %449 = vmatprep.subr.mxu0 0.0
        %450 = vmatpush1.msra.mxu0 0.0
        %451 = vmatprep.subr.mxu0 0.0
        %452 = vmatpush1.msra.mxu0 0.0
        %453 = vmatprep.subr.mxu0 0.0
        %454 = vmatpush1.msra.mxu0 0.0
        %455 = vmatprep.subr.mxu0 0.0
        %456 = vmatpush1.msra.mxu0 0.0
        %457 = vmatprep.subr.mxu0 0.0
        %458 = vmatpush1.msra.mxu0 0.0
        %459 = vmatprep.subr.mxu0 0.0
        %460 = vmatpush1.msra.mxu0 0.0
        %461 = vmatprep.subr.mxu0 0.0
        %462 = vmatpush1.msra.mxu0 0.0
        %463 = vmatprep.subr.mxu0 0.0
        %464 = vmatpush1.msra.mxu0 0.0
        %465 = vmatprep.subr.mxu0 0.0
        %466 = vmatpush1.msra.mxu0 0.0
        %467 = vmatprep.subr.mxu0 0.0
        %468 = vmatpush1.msra.mxu0 0.0
        %469 = vmatprep.subr.mxu0 0.0
        %470 = vmatpush1.msra.mxu0 0.0
        %471 = vmatprep.subr.mxu0 0.0
        %472 = vmatpush1.msra.mxu0 0.0
        %473 = vmatprep.subr.mxu0 0.0
        %474 = vmatpush1.msra.mxu0 0.0
        %475 = vmatprep.subr.mxu0 0.0
        %476 = vmatpush1.msra.mxu0 0.0
        %477 = vmatprep.subr.mxu0 0.0
        %478 = vmatpush1.msra.mxu0 0.0
        %479 = vmatprep.subr.mxu0 0.0
        %480 = vmatpush1.msra.mxu0 0.0
        %481 = vmatprep.subr.mxu0 0.0
        %482 = vmatpush1.msra.mxu0 0.0
        %483 = vmatprep.subr.mxu0 0.0
        %484 = vmatpush1.msra.mxu0 0.0
        %485 = vmatprep.subr.mxu0 0.0
        %486 = vmatpush1.msra.mxu0 0.0
        %487 = vmatprep.subr.mxu0 0.0
        %488 = vmatpush1.msra.mxu0 0.0
        %489 = vmatprep.subr.mxu0 0.0
        %490 = vmatpush1.msra.mxu0 0.0
        %491 = vmatprep.subr.mxu0 0.0
        %492 = vmatpush1.msra.mxu0 0.0
        %493 = vmatprep.mubr.f32.mxu0 0.0
        %494 = vmatmul.mubr.f32.gmra.mrb[0].mxu0 %v423
        %v495 = vpop.f32.mrb[0].mxu0
        %v496 = vadd.f32 %v416, %v495
        %v497 = vpop.f32.mrb[0].mxu0
        %v498 = vadd.f32 %v418, %v497
        %499 = vdwg.mxu0
        %v500 = vld [vmem:[%s5] sm:$0xff]
        %502 = vset.pattern.permute.xlu0 0
        %503 = vperm.xlu0 %502, %v500
        %v504 = vpop.permute.xlu0 %503
        %v506 = vadd.f32 %v496, %v504
        %v507 = vadd.f32 %v498, %v504
        %vm508 = vcmp.ge.f32.partialorder %v506, 0.0
        %vm509 = vcmp.ge.f32.partialorder %v507, 0.0
        %v510 = vmul.f32 %v506, 0.2
        %v511 = vmul.f32 %v507, 0.2
        %v512 = vsel %vm508, %v506, %v510
        %v513 = vsel %vm509, %v507, %v511
        %v514 = vld [vmem:[%s332] sm:$0xff]
        %516 = vset.pattern.permute.xlu0 0
        %517 = vperm.xlu0 %516, %v514
        %v518 = vpop.permute.xlu0 %517
        %v520 = vmul.f32 %v512, %v518
        %v521 = vmul.f32 %v513, %v518
        %522 = vst [vmem:[%s308] sm:$0xff] %v520
        %vm523 = vcmask 130048
        %524 = vst.msk [vmem:[%s308 + $0x8] sm:$0xff] %vm523, %v521
        %s525 = sand.u32 %s187, 1
        %s526 = scalar_lea.sflag [#allocation3], %s525
        %s527 = sand.u32 %s187, 1
        %s528 = smul.addr %s527, 16
        %s529 = scalar_lea.vmem [#allocation2], %s528
        // Predicated region
        $region45: #{tpu_custom_call.1} parent=43 // pred_check
          %p530 = pneg %p197
        $region46: #{tpu_custom_call.1} parent=43 // pred_check_branch
          %532 = sbr.rel (%p530) target = $region48
        $region47: #{tpu_custom_call.1} parent=43 // pred_region
          %s533 = smul.u32 2, %s25
          %s535 = ssub.s32 256, 256
          %536 = vsyncadd %s526, %s535
          %s537 = smul.addr %s24, 2
          %s538 = sadd.s32 %s533, %s537
          %s539 = smul.addr %s538, 128
          %s540 = scalar_lea.hbm %s6, %s539
          %s542 = sshll.u32 %s529, 4
          %s543 = int_to_ptr.vmem [resolvable:$true] %s542
          %545 = dma.vmem_to_hbm [thread:$0]  %s543, 256, %s540, %s526
        $region48: #{tpu_custom_call.1} parent=43 // pred_fallthru
          _
      $region44: #{tpu_custom_call.1} parent=5 // pred_fallthru
        _
      %p546 = scmp.le.s32.totalorder 2, %s15
      // Predicated region
      $region49: #{tpu_custom_call.1} parent=5 // pred_check
        %p547 = pneg %p546
      $region50: #{tpu_custom_call.1} parent=5 // pred_check_branch
        %549 = sbr.rel (%p547) target = $region52
      $region51: #{tpu_custom_call.1} parent=5 // pred_region
        %s550 = ssub.s32 %s15, 2
        // Predicated region
        $region53: #{tpu_custom_call.1} parent=51 // pred_check
          %p551 = pneg %p203
        $region54: #{tpu_custom_call.1} parent=51 // pred_check_branch
          %553 = sbr.rel (%p551) target = $region56
        $region55: #{tpu_custom_call.1} parent=51 // pred_region
          %s554 = sand.u32 %s188, 1
          %s555 = scalar_lea.sflag [#allocation3], %s554
          %s556 = sand.u32 %s188, 1
          %s557 = smul.addr %s556, 16
          %s558 = scalar_lea.vmem [#allocation2], %s557
          %559 = dma.done %s555, 256
        $region56: #{tpu_custom_call.1} parent=51 // pred_fallthru
          _
      $region52: #{tpu_custom_call.1} parent=5 // pred_fallthru
        _
    $region6: #{tpu_custom_call.1} parent=1 // loop_footer
      %s19 = sadd.s32 1, %s15
    $region7: #{tpu_custom_call.1} parent=1 // loop_footer_branch
      %14 = sbr.rel target = $region3
    $region8: #{tpu_custom_call.1} parent=1 // loop_exit
      _
    %560 = vsyncpa [#allocation3], 1
    %s561 = scalar_lea.sflag [#allocation3], 1
    %562 = vsyncpa %s561, 1

</llo_original>
